<compile_context>
chip_gen: v7x
topology: tpu7x:2x2x1
jax: 0.10.0
libtpu: 0.0.40
codegen_flags: <defaults>
</compile_context>

<pallas_src>
import math

import jax
import jax.numpy as jnp
import numpy as np
from jax.experimental import pallas as pl
from jax.experimental.pallas import tpu as pltpu


def _attentive_pooling_kernel(x_ref, w1_ref, b1_ref, w2_ref, o_ref):
    """One batch block of attentive pooling.

    x_ref:  (bb, N, D)  stored dtype (f32 or bf16) -- cast happens in-kernel
    w1_ref: (D, Hp)     compute dtype (att_dense.weight^T, zero-padded to Hp)
    b1_ref: (1, Hp)     f32 (att_dense.bias, zero-padded)
    w2_ref: (1, Hp)     f32 (dense.weight as a row vector, zero-padded)
    o_ref:  (bb, D)     f32 pooled user vectors
    """
    bb, n, d = x_ref.shape

    x = x_ref[...]                                        # (bb, N, D) stored dtype

    # In-kernel cast for the MXU (hidden under the block DMA).  Merge (bb, N)
    # into one tall M dimension -> a single 2-D MXU matmul with bb*N rows.
    xm = x.reshape(bb * n, d).astype(w1_ref.dtype)

    # ---- att_dense + tanh: MXU matmul, f32 accumulation; tanh on the EUP ----
    hidden = jnp.dot(xm, w1_ref[...], preferred_element_type=jnp.float32)
    hidden = jnp.tanh(hidden + b1_ref[...])               # (bb*N, Hp) f32

    # ---- dense(Hp -> 1): VPU multiply + lane reduce --------------------------
    # (a width-1 MXU matmul would waste the systolic array; zero-padded
    #  columns contribute exactly 0 to the score.)
    scores = jnp.sum(hidden * w2_ref[...], axis=-1)       # (bb*N,) f32
    scores = scores.reshape(bb, n)                        # tiny relayout
    # NOTE: dense.bias shifts every score equally; softmax is shift-invariant,
    # so it cancels exactly and is not shipped into the kernel.

    # ---- softmax over the sequence axis (torch dim=1) ------------------------
    m = jnp.max(scores, axis=-1, keepdims=True)
    p = jnp.exp(scores - m)
    att = p * pl.reciprocal(jnp.sum(p, axis=-1, keepdims=True), approx=True)

    # ---- weighted pooling: product in stored dtype, accumulate in f32 --------
    weighted = x * att.astype(x.dtype)[:, :, None]        # (bb, N, D)
    o_ref[...] = jnp.sum(weighted, axis=1, dtype=jnp.float32)


def attentive_pooling_forward(x, params, *, compute_dtype=jnp.bfloat16,
                              block_b=64,
                              vmem_budget_bytes=32 * 1024 * 1024):
    """Forward pass of the PyTorch `AttentivePooling` module (eval mode)."""
    B, N, D = x.shape
    H = params["w_att"].shape[1]                          # 200
    Hp = ((H + 127) // 128) * 128                         # 200 -> 256 (full lanes)
    cd = jnp.dtype(compute_dtype)

    # Weights are tiny: pad + cast once in the wrapper (exact zero padding).
    w1 = jnp.zeros((D, Hp), cd).at[:, :H].set(params["w_att"].astype(cd))
    b1 = jnp.zeros((1, Hp), jnp.float32).at[:, :H].set(
        params["b_att"].reshape(1, H).astype(jnp.float32))
    w2 = jnp.zeros((1, Hp), jnp.float32).at[:, :H].set(
        params["w_dense"].reshape(1, H).astype(jnp.float32))

    x_isz = jnp.dtype(x.dtype).itemsize

    def vmem_bytes(bb_):
        xb = 2 * bb_ * N * D * x_isz          # double-buffered x blocks
        ob = 2 * bb_ * D * 4                  # double-buffered output blocks
        xmm = bb_ * N * D * cd.itemsize       # casted matmul operand
        hid = bb_ * N * Hp * 4                # f32 hidden temporary
        wtd = bb_ * N * D * x_isz             # pooled product temporary
        wts = 2 * (D * Hp * cd.itemsize + 2 * Hp * 4)
        return xb + ob + xmm + hid + wtd + wts

    # Batch block: as big as the VMEM budget allows (per-grid-step overhead is
    # ~0.35us; tiny blocks cap well below the HBM roofline and starve the MXU
    # of tall M).  Kept a multiple of 8 sublanes whenever the batch axis is
    # actually tiled.
    bb = max(1, min(block_b, B))
    if bb < B:
        bb = max(8, (bb // 8) * 8)
    # v7x has 2 TensorCores: keep the (parallel) batch grid at >= 2 steps.
    if bb == B and B >= 16:
        bb = ((pl.cdiv(B, 2) + 7) // 8) * 8
    # Generation-aware VMEM budget: v7x has only 64 MiB physical VMEM.
    while bb > 8 and vmem_bytes(bb) > vmem_budget_bytes:
        bb = max(8, ((bb // 2) // 8) * 8)

    grid = (pl.cdiv(B, bb),)

    out = pl.pallas_call(
        _attentive_pooling_kernel,
        out_shape=jax.ShapeDtypeStruct((B, D), jnp.float32),
        grid_spec=pltpu.PrefetchScalarGridSpec(
            num_scalar_prefetch=0,
            grid=grid,
            in_specs=[
                # NOTE: on v7x, consider pipeline_mode=pl.Buffered(3) here if
                # xprof still shows exposed DMA after block enlargement.
                pl.BlockSpec((bb, N, D), lambda i: (i, 0, 0)),   # x (stored dtype)
                pl.BlockSpec((D, Hp), lambda i: (0, 0)),         # W_att (padded)
                pl.BlockSpec((1, Hp), lambda i: (0, 0)),         # b_att (padded)
                pl.BlockSpec((1, Hp), lambda i: (0, 0)),         # w_dense (padded)
            ],
            out_specs=pl.BlockSpec((bb, D), lambda i: (i, 0)),   # user_vec
        ),
        compiler_params=pltpu.CompilerParams(
            dimension_semantics=("parallel",),
            vmem_limit_bytes=48 * 1024 * 1024,
        ),
    )(x, w1, b1, w2)
    return out


def init_attentive_pooling_params(key, dim2, hidden=200):
    """PyTorch nn.Linear default init (U(-1/sqrt(in), 1/sqrt(in)))."""
    k1, k2, k3, k4 = jax.random.split(key, 4)
    bound1 = 1.0 / math.sqrt(dim2)
    w_att = jax.random.uniform(k1, (hidden, dim2), jnp.float32,
                               -bound1, bound1).T               # store (D, H)
    b_att = jax.random.uniform(k2, (hidden,), jnp.float32, -bound1, bound1)
    bound2 = 1.0 / math.sqrt(hidden)
    w_dense = jax.random.uniform(k3, (hidden,), jnp.float32, -bound2, bound2)
    b_dense = jax.random.uniform(k4, (1,), jnp.float32, -bound2, bound2)
    return {"w_att": w_att, "b_att": b_att,
            "w_dense": w_dense, "b_dense": b_dense}


def _reference_forward(x, params):
    """Pure-JAX f32 reference mirroring the PyTorch forward (eval mode)."""
    att = jnp.tanh(x @ params["w_att"] + params["b_att"])       # (B, N, 200)
    scores = att @ params["w_dense"] + params["b_dense"][0]     # (B, N)
    a = jax.nn.softmax(scores, axis=1)                          # softmax over seq
    return jnp.einsum("bnd,bn->bd", x, a)                       # (B, D)


if __name__ == "__main__":
    B, N, D = 2, 8, 32   # batch, sequence length (dim1), feature dim (dim2)

    key = jax.random.PRNGKey(0)
    kx, kp = jax.random.split(key)
    x = jax.random.normal(kx, (B, N, D), jnp.float32)
    params = init_attentive_pooling_params(kp, D)

    ref = _reference_forward(x, params)

    # f32 compute path (only the approx reciprocal differs from the reference).
    out_f32 = jax.block_until_ready(
        attentive_pooling_forward(x, params, compute_dtype=jnp.float32))
    np.testing.assert_allclose(np.asarray(out_f32), np.asarray(ref),
                               rtol=5e-3, atol=5e-3)

    # bf16-operand MXU path (default; f32 accumulation / softmax).
    out_bf16 = jax.block_until_ready(
        attentive_pooling_forward(x, params, compute_dtype=jnp.bfloat16))
    np.testing.assert_allclose(np.asarray(out_bf16), np.asarray(ref),
                               rtol=3e-2, atol=3e-2)

    print("KERNEL_OK")
</pallas_src>

<mosaic_0001>
module attributes {stable_mosaic.version = 11 : i64} {
  func.func @_attentive_pooling_kernel(%arg0: i32, %arg1: memref<2x8x32xf32, #tpu.memory_space<vmem>>, %arg2: memref<32x256xf32, #tpu.memory_space<vmem>>, %arg3: memref<1x256xf32, #tpu.memory_space<vmem>>, %arg4: memref<1x256xf32, #tpu.memory_space<vmem>>, %arg5: memref<2x32xf32, #tpu.memory_space<vmem>>) attributes {dimension_semantics = [#tpu.dimension_semantics<parallel>], iteration_bounds = array<i64: 1>, scalar_prefetch = 0 : i64, scratch_operands = 0 : i64, tpu.core_type = #tpu.core_type<tc>, window_params = [{transform_indices = @transform_0, window_bounds = array<i64: 2, 8, 32>}, {pipeline_mode = #tpu.pipeline_mode<synchronous>, transform_indices = @transform_1, window_bounds = array<i64: 32, 256>}, {pipeline_mode = #tpu.pipeline_mode<synchronous>, transform_indices = @transform_2, window_bounds = array<i64: 1, 256>}, {pipeline_mode = #tpu.pipeline_mode<synchronous>, transform_indices = @transform_3, window_bounds = array<i64: 1, 256>}, {transform_indices = @transform_4, window_bounds = array<i64: 2, 32>}]} {
    %c0 = arith.constant 0 : index
    %c0_0 = arith.constant 0 : index
    %c0_1 = arith.constant 0 : index
    %0 = vector.load %arg1[%c0, %c0_0, %c0_1] : memref<2x8x32xf32, #tpu.memory_space<vmem>>, vector<2x8x32xf32>
    %1 = vector.shape_cast %0 : vector<2x8x32xf32> to vector<16x32xf32>
    %c0_2 = arith.constant 0 : index
    %c0_3 = arith.constant 0 : index
    %2 = vector.load %arg2[%c0_2, %c0_3] : memref<32x256xf32, #tpu.memory_space<vmem>>, vector<32x256xf32>
    %cst = arith.constant dense<0.000000e+00> : vector<16x256xf32>
    %3 = tpu.matmul %1, %2, %cst {dimension_numbers = #tpu.dot_dimension_numbers<[1], [0], [0], [1], [0, 0, 1, 1], [], []>} : vector<16x32xf32>, vector<32x256xf32>, vector<16x256xf32> -> vector<16x256xf32>
    %c0_4 = arith.constant 0 : index
    %c0_5 = arith.constant 0 : index
    %4 = vector.load %arg3[%c0_4, %c0_5] : memref<1x256xf32, #tpu.memory_space<vmem>>, vector<1x256xf32>
    %5 = vector.broadcast %4 : vector<1x256xf32> to vector<16x256xf32>
    %6 = arith.addf %3, %5 : vector<16x256xf32>
    %7 = math.tanh %6 : vector<16x256xf32>
    %c0_6 = arith.constant 0 : index
    %c0_7 = arith.constant 0 : index
    %8 = vector.load %arg4[%c0_6, %c0_7] : memref<1x256xf32, #tpu.memory_space<vmem>>, vector<1x256xf32>
    %9 = vector.broadcast %8 : vector<1x256xf32> to vector<16x256xf32>
    %10 = arith.mulf %7, %9 : vector<16x256xf32>
    %cst_8 = arith.constant dense<0.000000e+00> : vector<16xf32>
    %11 = vector.multi_reduction <add>, %10, %cst_8 [1] : vector<16x256xf32> to vector<16xf32>
    %12 = vector.shape_cast %11 : vector<16xf32> to vector<2x8xf32>
    %cst_9 = arith.constant dense<0xFF800000> : vector<2xf32>
    %13 = vector.multi_reduction <maximumf>, %12, %cst_9 [1] : vector<2x8xf32> to vector<2xf32>
    %14 = vector.shape_cast %13 : vector<2xf32> to vector<2x1xf32>
    %15 = vector.broadcast %14 : vector<2x1xf32> to vector<2x8xf32>
    %16 = arith.subf %12, %15 : vector<2x8xf32>
    %17 = math.exp %16 : vector<2x8xf32>
    %cst_10 = arith.constant dense<0.000000e+00> : vector<2xf32>
    %18 = vector.multi_reduction <add>, %17, %cst_10 [1] : vector<2x8xf32> to vector<2xf32>
    %19 = vector.shape_cast %18 : vector<2xf32> to vector<2x1xf32>
    %20 = tpu.reciprocal %19 {approx = true} : vector<2x1xf32> -> vector<2x1xf32>
    %21 = vector.broadcast %20 : vector<2x1xf32> to vector<2x8xf32>
    %22 = arith.mulf %17, %21 : vector<2x8xf32>
    %23 = vector.shape_cast %22 : vector<2x8xf32> to vector<2x8x1xf32>
    %24 = vector.broadcast %23 : vector<2x8x1xf32> to vector<2x8x32xf32>
    %25 = arith.mulf %0, %24 : vector<2x8x32xf32>
    %cst_11 = arith.constant dense<0.000000e+00> : vector<2x32xf32>
    %26 = vector.multi_reduction <add>, %25, %cst_11 [1] : vector<2x8x32xf32> to vector<2x32xf32>
    %c0_12 = arith.constant 0 : index
    %c0_13 = arith.constant 0 : index
    %27 = vector.load %arg5[%c0_12, %c0_13] : memref<2x32xf32, #tpu.memory_space<vmem>>, vector<2x32xf32>
    tpu.vector_store %arg5[%c0_12, %c0_13], %26 {strides = array<i32>} : memref<2x32xf32, #tpu.memory_space<vmem>>, vector<2x32xf32>,
    return
  }
  func.func @transform_0(%arg0: i32) -> (i32, i32, i32) {
    %c0_i32 = arith.constant 0 : i32
    %c0_i32_0 = arith.constant 0 : i32
    %c0_i32_1 = arith.constant 0 : i32
    return %arg0, %c0_i32, %c0_i32_0 : i32, i32, i32
  }
  func.func @transform_1(%arg0: i32) -> (i32, i32) {
    %c0_i32 = arith.constant 0 : i32
    %c0_i32_0 = arith.constant 0 : i32
    %c0_i32_1 = arith.constant 0 : i32
    return %c0_i32, %c0_i32_0 : i32, i32
  }
  func.func @transform_2(%arg0: i32) -> (i32, i32) {
    %c0_i32 = arith.constant 0 : i32
    %c0_i32_0 = arith.constant 0 : i32
    %c0_i32_1 = arith.constant 0 : i32
    return %c0_i32, %c0_i32_0 : i32, i32
  }
  func.func @transform_3(%arg0: i32) -> (i32, i32) {
    %c0_i32 = arith.constant 0 : i32
    %c0_i32_0 = arith.constant 0 : i32
    %c0_i32_1 = arith.constant 0 : i32
    return %c0_i32, %c0_i32_0 : i32, i32
  }
  func.func @transform_4(%arg0: i32) -> (i32, i32) {
    %c0_i32 = arith.constant 0 : i32
    %c0_i32_0 = arith.constant 0 : i32
    return %arg0, %c0_i32 : i32, i32
  }
}

</mosaic_0001>

<llo_original>
// kernel: tpu_custom_call.1
$region0: #{tpu_custom_call.1}
  #allocation0 [shape = 'u32[]', space=smem, size = 0x4, offset = 0x4, fixed_abs, tag = 'smem constant byte address 0x4 - core index']
  #allocation1 [shape = 'u32[144,128]{1,0:T(1,128)}', space=vmem, size = 0x12000, scoped, tag = 'internal scratch']
  %s0 = inlined_call_operand.hbm [shape: f32[2,8,32], index: 0, kind: input, shape index: {}]
  %s1 = inlined_call_operand.hbm [shape: f32[32,256], index: 1, kind: input, shape index: {}]
  %s2 = inlined_call_operand.vmem [shape: f32[1,256], index: 2, kind: input, shape index: {}]
  %s3 = inlined_call_operand.vmem [shape: f32[1,256], index: 3, kind: input, shape index: {}]
  %s4 = inlined_call_operand.hbm [shape: f32[2,32], index: 4, kind: output, shape index: {}]
  %s5 = sld [smem:[#allocation0]]
  $region34: #{tpu_custom_call.1} parent=0
    _
  %s7 = ssub.s32 1, %s5
  %s8 = scalar_select 0, %s7, %s5
  $region1: #{tpu_custom_call.1} parent=0
    #allocation2 [shape = 'u8[8192]{0}', space=vmem, size = 0x2000, scoped, tag = 'input window, operand 0, single buffered']
    #allocation3 [shape = 's32[1]{0}', space=sflag, size = 0x4, scoped, tag = 'scoped memory for tpu_custom_call.1']
    #allocation4 [shape = 's32[1]{0}', space=sflag, size = 0x4, scoped, tag = 'scoped memory for tpu_custom_call.1']
    #allocation5 [shape = 'u8[32768]{0}', space=vmem, size = 0x8000, scoped, tag = 'input window, operand 1, single buffered']
    #allocation6 [shape = 's32[1]{0}', space=sflag, size = 0x4, scoped, tag = 'scoped memory for tpu_custom_call.1']
    #allocation7 [shape = 'u8[1024]{0}', space=vmem, size = 0x400, scoped, tag = 'output window, operand 0, single buffered']
    %9 = vsyncpa [#allocation3], 0
    %10 = vsyncpa [#allocation6], 0
    %11 = vsyncpa [#allocation4], 0
    // Predicated region
    $region2: #{tpu_custom_call.1} parent=1 // pred_check
      _
    $region3: #{tpu_custom_call.1} parent=1 // pred_check_branch
      %13 = sbr.rel (0) target = $region5
    $region4: #{tpu_custom_call.1} parent=1 // pred_region
      %s15 = ssub.s32 256, 256
      %16 = vsyncadd [#allocation3], %s15
      %s17 = sshll.u32 [#allocation2], 4
      %s18 = int_to_ptr.vmem [resolvable:$true] %s17
      %23 = dma.hbm_to_vmem [thread:$0]  %s0, 256, %s18, [#allocation3], 128, 128, 8
    $region5: #{tpu_custom_call.1} parent=1 // pred_fallthru
      _
    // Predicated region
    $region6: #{tpu_custom_call.1} parent=1 // pred_check
      _
    $region7: #{tpu_custom_call.1} parent=1 // pred_check_branch
      %25 = sbr.rel (0) target = $region9
    $region8: #{tpu_custom_call.1} parent=1 // pred_region
      %s27 = ssub.s32 1024, 1024
      %28 = vsyncadd [#allocation6], %s27
      %s29 = sshll.u32 [#allocation5], 4
      %s30 = int_to_ptr.vmem [resolvable:$true] %s29
      %35 = dma.hbm_to_vmem [thread:$0]  %s1, 1024, %s30, [#allocation6], 256, 256, 16
    $region9: #{tpu_custom_call.1} parent=1 // pred_fallthru
      _
    // Predicated region
    $region10: #{tpu_custom_call.1} parent=1 // pred_check
      _
    $region11: #{tpu_custom_call.1} parent=1 // pred_check_branch
      %37 = sbr.rel (0) target = $region13
    $region12: #{tpu_custom_call.1} parent=1 // pred_region
      _
    $region13: #{tpu_custom_call.1} parent=1 // pred_fallthru
      _
    // Predicated region
    $region14: #{tpu_custom_call.1} parent=1 // pred_check
      _
    $region15: #{tpu_custom_call.1} parent=1 // pred_check_branch
      %39 = sbr.rel (0) target = $region17
    $region16: #{tpu_custom_call.1} parent=1 // pred_region
      _
    $region17: #{tpu_custom_call.1} parent=1 // pred_fallthru
      _
    // Predicated region
    $region18: #{tpu_custom_call.1} parent=1 // pred_check
      _
    $region19: #{tpu_custom_call.1} parent=1 // pred_check_branch
      %41 = sbr.rel (0) target = $region21
    $region20: #{tpu_custom_call.1} parent=1 // pred_region
      %42 = dma.done [#allocation3], 256
    $region21: #{tpu_custom_call.1} parent=1 // pred_fallthru
      _
    // Predicated region
    $region22: #{tpu_custom_call.1} parent=1 // pred_check
      _
    $region23: #{tpu_custom_call.1} parent=1 // pred_check_branch
      %44 = sbr.rel (0) target = $region25
    $region24: #{tpu_custom_call.1} parent=1 // pred_region
      %45 = dma.done [#allocation6], 1024
    $region25: #{tpu_custom_call.1} parent=1 // pred_fallthru
      _
    %v46 = vld [vmem:[#allocation2] sm:$0xff]
    %v47 = vld [vmem:[#allocation2 + $0x8] sm:$0xff]
    %v48 = vld [vmem:[#allocation5] sm:$0xff]
    %v49 = vld [vmem:[#allocation5 + $0x8] sm:$0xff]
    %v50 = vld [vmem:[#allocation5 + $0x10] sm:$0xff]
    %v51 = vld [vmem:[#allocation5 + $0x18] sm:$0xff]
    %v52 = vld [vmem:[#allocation5 + $0x20] sm:$0xff]
    %v53 = vld [vmem:[#allocation5 + $0x28] sm:$0xff]
    %v54 = vld [vmem:[#allocation5 + $0x30] sm:$0xff]
    %v55 = vld [vmem:[#allocation5 + $0x38] sm:$0xff]
    %v56 = vld [vmem:[%s2] sm:$0x3]
    %v58 = vlaneseq
    %v59 = vshrl.u32 %v58, 7
    %v60 = vsub.s32 0, %v59
    %v61 = vrot.slane %v56, %v60
    %v62 = vlaneseq
    %v63 = vshrl.u32 %v62, 7
    %v64 = vsub.s32 1, %v63
    %v65 = vrot.slane %v56, %v64
    %vm68 = vcmask 261120
    %v70 = vsel %vm68, %v46, 0
    %v73 = vsel %vm68, %v47, 0
    %75 = vmatprep.subr.mxu0 %v49
    %76 = vmatpush1.msra.mxu0 %v48
    %77 = vmatprep.subr.mxu0 %v51
    %78 = vmatpush1.msra.mxu0 %v50
    %79 = vmatprep.subr.mxu0 %v53
    %80 = vmatpush1.msra.mxu0 %v52
    %81 = vmatprep.subr.mxu0 %v55
    %82 = vmatpush1.msra.mxu0 %v54
    %83 = vmatprep.subr.mxu0 0.0
    %84 = vmatpush1.msra.mxu0 0.0
    %85 = vmatprep.subr.mxu0 0.0
    %86 = vmatpush1.msra.mxu0 0.0
    %87 = vmatprep.subr.mxu0 0.0
    %88 = vmatpush1.msra.mxu0 0.0
    %89 = vmatprep.subr.mxu0 0.0
    %90 = vmatpush1.msra.mxu0 0.0
    %91 = vmatprep.subr.mxu0 0.0
    %92 = vmatpush1.msra.mxu0 0.0
    %93 = vmatprep.subr.mxu0 0.0
    %94 = vmatpush1.msra.mxu0 0.0
    %95 = vmatprep.subr.mxu0 0.0
    %96 = vmatpush1.msra.mxu0 0.0
    %97 = vmatprep.subr.mxu0 0.0
    %98 = vmatpush1.msra.mxu0 0.0
    %99 = vmatprep.subr.mxu0 0.0
    %100 = vmatpush1.msra.mxu0 0.0
    %101 = vmatprep.subr.mxu0 0.0
    %102 = vmatpush1.msra.mxu0 0.0
    %103 = vmatprep.subr.mxu0 0.0
    %104 = vmatpush1.msra.mxu0 0.0
    %105 = vmatprep.subr.mxu0 0.0
    %106 = vmatpush1.msra.mxu0 0.0
    %107 = vmatprep.subr.mxu0 0.0
    %108 = vmatpush1.msra.mxu0 0.0
    %109 = vmatprep.subr.mxu0 0.0
    %110 = vmatpush1.msra.mxu0 0.0
    %111 = vmatprep.subr.mxu0 0.0
    %112 = vmatpush1.msra.mxu0 0.0
    %113 = vmatprep.subr.mxu0 0.0
    %114 = vmatpush1.msra.mxu0 0.0
    %115 = vmatprep.subr.mxu0 0.0
    %116 = vmatpush1.msra.mxu0 0.0
    %117 = vmatprep.subr.mxu0 0.0
    %118 = vmatpush1.msra.mxu0 0.0
    %119 = vmatprep.subr.mxu0 0.0
    %120 = vmatpush1.msra.mxu0 0.0
    %121 = vmatprep.subr.mxu0 0.0
    %122 = vmatpush1.msra.mxu0 0.0
    %123 = vmatprep.subr.mxu0 0.0
    %124 = vmatpush1.msra.mxu0 0.0
    %125 = vmatprep.subr.mxu0 0.0
    %126 = vmatpush1.msra.mxu0 0.0
    %127 = vmatprep.subr.mxu0 0.0
    %128 = vmatpush1.msra.mxu0 0.0
    %129 = vmatprep.subr.mxu0 0.0
    %130 = vmatpush1.msra.mxu0 0.0
    %131 = vmatprep.subr.mxu0 0.0
    %132 = vmatpush1.msra.mxu0 0.0
    %133 = vmatprep.subr.mxu0 0.0
    %134 = vmatpush1.msra.mxu0 0.0
    %135 = vmatprep.subr.mxu0 0.0
    %136 = vmatpush1.msra.mxu0 0.0
    %137 = vmatprep.subr.mxu0 0.0
    %138 = vmatpush1.msra.mxu0 0.0
    %139 = vmatprep.mubr.f32.mxu0 0.0
    %140 = vmatmul.mubr.f32.gmra.mrb[0].mxu0 %v70
    %v141 = vpop.f32.mrb[0].mxu0
    %v142 = vadd.f32 %v61, %v141
    %v143 = vpop.f32.mrb[0].mxu0
    %v144 = vadd.f32 %v65, %v143
    %145 = vmatprep.mubr.f32.mxu0 0.0
    %146 = vmatmul.mubr.f32.gmra.mrb[0].mxu0 %v73
    %v147 = vpop.f32.mrb[0].mxu0
    %v148 = vadd.f32 %v61, %v147
    %v149 = vpop.f32.mrb[0].mxu0
    %v150 = vadd.f32 %v65, %v149
    %151 = vdwg.mxu0
    %v152 = vtanh.pop %v142
    %v153 = vtanh.pop %v144
    %v154 = vtanh.pop %v148
    %v155 = vtanh.pop %v150
    %v156 = vld [vmem:[%s3] sm:$0x3]
    %v158 = vlaneseq
    %v159 = vshrl.u32 %v158, 7
    %v160 = vsub.s32 0, %v159
    %v161 = vrot.slane %v156, %v160
    %v162 = vlaneseq
    %v163 = vshrl.u32 %v162, 7
    %v164 = vsub.s32 1, %v163
    %v165 = vrot.slane %v156, %v164
    %v168 = vmul.f32 %v152, %v161
    %v169 = vmul.f32 %v153, %v165
    %v170 = vmul.f32 %v154, %v161
    %v171 = vmul.f32 %v155, %v165
    %v172 = vadd.f32 %v168, %v169
    %173 = vadd.xlane.f32.xlu0 %v172
    %v174 = vpop.xlane.xlu0 %173
    %v175 = vadd.f32 %v170, %v171
    %176 = vadd.xlane.f32.xlu0 %v175
    %v177 = vpop.xlane.xlu0 %176
    %v180 = vlaneseq
    %v181 = vand.u32 %v180, 127
    %v182 = vlaneseq
    %v183 = vshrl.u32 %v182, 7
    %v184 = vsub.s32 %v181, %v183
    %v185 = vrot.slane %v174, %v184
    %v186 = vlaneseq
    %v187 = vshrl.u32 %v186, 7
    %v188 = vsub.s32 %v181, %v187
    %v189 = vrot.slane %v177, %v188
    %vm190 = vcmask 1041409
    %v191 = vsel %vm190, %v189, %v185
    %vm193 = vcmask 58368
    %v194 = vsel %vm193, %v191, -inf
    %195 = vmax.xlane.f32.xlu0 %v194
    %v196 = vpop.xlane.xlu0 %195
    %v198 = vlaneseq
    %v199 = vshrl.u32 %v198, 7
    %v200 = vsub.s32 0, %v199
    %v201 = vrot.slane %v196, %v200
    %v202 = vlaneseq
    %v203 = vshrl.u32 %v202, 7
    %v204 = vsub.s32 1, %v203
    %v205 = vrot.slane %v196, %v204
    %v208 = vsub.f32 %v174, %v201
    %v209 = vsub.f32 %v177, %v205
    %v210 = vmul.f32 %v208, 1.442695
    %v211 = vpow.pop %v210
    %v212 = vmul.f32 %v209, 1.442695
    %v213 = vpow.pop %v212
    %216 = vset.pattern.permute.xlu0 0
    %217 = vperm.xlu0 %216, %v211
    %v218 = vpop.permute.xlu0 %217
    %219 = vset.pattern.permute.xlu0 0
    %220 = vperm.xlu0 %219, %v213
    %v221 = vpop.permute.xlu0 %220
    %v222 = vlaneseq
    %v223 = vshrl.u32 %v222, 7
    %v224 = vsub.s32 %v181, %v223
    %v225 = vrot.slane %v218, %v224
    %v226 = vlaneseq
    %v227 = vshrl.u32 %v226, 7
    %v228 = vsub.s32 %v181, %v227
    %v229 = vrot.slane %v221, %v228
    %v230 = vsel %vm190, %v229, %v225
    %v232 = vsel %vm193, %v230, 0.0
    %233 = vadd.xlane.f32.xlu0 %v232
    %v234 = vpop.xlane.xlu0 %233
    %v235 = vrcp.pop %v234
    %v237 = vlaneseq
    %v238 = vshrl.u32 %v237, 7
    %v239 = vsub.s32 0, %v238
    %v240 = vrot.slane %v235, %v239
    %v241 = vlaneseq
    %v242 = vshrl.u32 %v241, 7
    %v243 = vsub.s32 1, %v242
    %v244 = vrot.slane %v235, %v243
    %v247 = vmul.f32 %v211, %v240
    %v248 = vmul.f32 %v213, %v244
    %250 = vset.pattern.permute.xlu0 0
    %251 = vperm.xlu0 %250, %v247
    %v252 = vpop.permute.xlu0 %251
    %255 = vset.pattern.permute.xlu0 0
    %256 = vperm.xlu0 %255, %v248
    %v257 = vpop.permute.xlu0 %256
    %v259 = vmul.f32 %v46, %v252
    %v260 = vmul.f32 %v47, %v257
    %v261 = vsel %vm68, %v259, 0.0
    %v262 = vrot.slane %v261, 4
    %v263 = vadd.f32 %v261, %v262
    %v264 = vrot.slane %v263, 2
    %v265 = vadd.f32 %v263, %v264
    %v266 = vrot.slane %v265, 1
    %v267 = vadd.f32 %v265, %v266
    %v268 = vsel %vm68, %v260, 0.0
    %v269 = vrot.slane %v268, 4
    %v270 = vadd.f32 %v268, %v269
    %v271 = vrot.slane %v270, 2
    %v272 = vadd.f32 %v270, %v271
    %v273 = vrot.slane %v272, 1
    %v274 = vadd.f32 %v272, %v273
    %v277 = vsel %vm190, %v274, %v267
    %vm279 = vcmask 254976
    %280 = vst.msk [vmem:[#allocation7] sm:$0x3] %vm279, %v277
    // Predicated region
    $region26: #{tpu_custom_call.1} parent=1 // pred_check
      _
    $region27: #{tpu_custom_call.1} parent=1 // pred_check_branch
      %282 = sbr.rel (0) target = $region29
    $region28: #{tpu_custom_call.1} parent=1 // pred_region
      %s284 = ssub.s32 32, 32
      %285 = vsyncadd [#allocation4], %s284
      %s287 = sshll.u32 [#allocation7], 4
      %s288 = int_to_ptr.vmem [resolvable:$true] %s287
      %290 = dma.vmem_to_hbm [thread:$0]  %s288, 32, %s4, [#allocation4]
    $region29: #{tpu_custom_call.1} parent=1 // pred_fallthru
      _
    // Predicated region
    $region30: #{tpu_custom_call.1} parent=1 // pred_check
      _
    $region31: #{tpu_custom_call.1} parent=1 // pred_check_branch
      %292 = sbr.rel (0) target = $region33
    $region32: #{tpu_custom_call.1} parent=1 // pred_region
      %293 = dma.done [#allocation4], 32
    $region33: #{tpu_custom_call.1} parent=1 // pred_fallthru
      _
    %294 = vsyncpa [#allocation3], 1
    %295 = vsyncpa [#allocation6], 1
    %296 = vsyncpa [#allocation4], 1

</llo_original>
